<compile_context>
chip_gen: v7x
topology: tpu7x:2x2x1
jax: 0.10.0
libtpu: 0.0.40
codegen_flags: <defaults>
</compile_context>

<pallas_src>
import functools

import jax
import jax.numpy as jnp
from jax import lax
from jax.experimental import pallas as pl
from jax.experimental.pallas import tpu as pltpu


def _pos_embed_kernel(pos_ref, w_ref, mu_ref, out_ref, *, epsilon):
    # pos_ref : (s_tile, 1)      int32   positions (already offset, >= 0)
    # w_ref   : (n_tot, d_tile)  f32     shared embedding table slice
    # mu_ref  : (n_tot, d_tile)  f32     perturbation slice for this p
    # out_ref : (s_tile, d_tile) f32
    s_tile = out_ref.shape[0]
    n_tot = w_ref.shape[0]

    pos = pos_ref[...]                                            # (s_tile, 1)
    ids = lax.broadcasted_iota(jnp.int32, (s_tile, n_tot), 1)     # (s_tile, n_tot)
    onehot = (pos == ids).astype(w_ref.dtype)                     # one-hot gather matrix

    # Gather via MXU: base rows + perturbation of only the gathered rows.
    base = jnp.dot(onehot, w_ref[...], preferred_element_type=jnp.float32)
    pert = jnp.dot(onehot, mu_ref[...], preferred_element_type=jnp.float32)

    out_ref[...] = (base + jnp.float32(epsilon) * pert).astype(out_ref.dtype)


def _pick_tile(dim, pref, align):
    """Largest multiple of `align` that divides `dim` and is <= pref, else full dim."""
    if dim <= pref:
        return dim
    t = (pref // align) * align
    while t >= align:
        if dim % t == 0:
            return t
        t -= align
    return dim


def parallel_opt_learned_positional_embedding(attention_mask, weight, mu, *,
                                              epsilon=0.01, offset=2,
                                              past_key_values_length=0,
                                              s_tile=None, d_tile=None):
    P, n_tot, D = mu.shape
    B, _ = attention_mask.shape
    mask = attention_mask.astype(jnp.int32)

    # positions = cumsum(mask)*mask - 1, slice past_kv, + offset  (cheap wrapper glue)
    positions = jnp.cumsum(mask, axis=1) * mask - 1
    if past_key_values_length:
        positions = positions[:, past_key_values_length:]
    positions = positions + offset
    S = positions.shape[1]
    positions = positions.reshape(B, S, 1).astype(jnp.int32)

    st = s_tile if s_tile is not None else _pick_tile(S, 256, 8)
    dt = d_tile if d_tile is not None else _pick_tile(D, 512, 128)

    kernel = functools.partial(_pos_embed_kernel, epsilon=epsilon)

    out = pl.pallas_call(
        kernel,
        out_shape=jax.ShapeDtypeStruct((P, B, S, D), weight.dtype),
        grid_spec=pltpu.PrefetchScalarGridSpec(
            num_scalar_prefetch=0,
            grid=(P, B, S // st, D // dt),
            in_specs=[
                # positions for this (b, s_tile): tiny int32 column vector
                pl.BlockSpec((None, st, 1), lambda p, b, si, di: (b, si, 0)),
                # shared embedding table, tiled along D
                pl.BlockSpec((n_tot, dt), lambda p, b, si, di: (0, di)),
                # per-parallel perturbation slab, tiled along D (leading dim squeezed)
                pl.BlockSpec((None, n_tot, dt), lambda p, b, si, di: (p, 0, di)),
            ],
            out_specs=pl.BlockSpec((None, None, st, dt),
                                   lambda p, b, si, di: (p, b, si, di)),
        ),
        compiler_params=pltpu.CompilerParams(
            dimension_semantics=("parallel", "parallel", "parallel", "parallel"),
            vmem_limit_bytes=64 * 1024 * 1024),
    )(positions, weight, mu)
    return out


def _reference(attention_mask, weight, mu, *, epsilon, offset, past_key_values_length=0):
    # Plain-JAX reference of the torch forward (freeze=False branch).
    P = mu.shape[0]
    m = attention_mask.astype(jnp.int32)
    positions = jnp.cumsum(m, axis=1) * m - 1
    if past_key_values_length:
        positions = positions[:, past_key_values_length:]
    positions = positions + offset
    wp = weight[None] + epsilon * mu                       # (P, n_tot, D)
    return jnp.stack([wp[i][positions] for i in range(P)], axis=0)


if __name__ == "__main__":
    P = 8                # num_parallel
    num_embeddings = 16
    offset = 2
    D = 32               # embedding_dim
    B = 2
    S = 8
    padding_idx = 1
    epsilon = 0.01
    n_tot = num_embeddings + offset

    key = jax.random.PRNGKey(0)
    kw, km, kmask = jax.random.split(key, 3)

    # Deterministic synthetic parameters (nn.Embedding-like init, padding row zeroed).
    weight = jax.random.normal(kw, (n_tot, D), dtype=jnp.float32)
    if padding_idx is not None:
        weight = weight.at[padding_idx].set(0.0)

    # mu ~ torch.randint(0,2,...)*2-1  -> values in {-1,+1}
    # (torch draws mu inside forward; here it is generated host-side and passed in.
    #  freeze=True would simply be mu = zeros.)
    mu = jax.random.randint(km, (P, n_tot, D), 0, 2).astype(jnp.float32) * 2.0 - 1.0

    # attention mask with some right-padding in the second batch row
    lengths = jnp.array([S, S - 3], dtype=jnp.int32)
    attention_mask = (jnp.arange(S)[None, :] < lengths[:, None]).astype(jnp.int32)

    # --- case 1: past_key_values_length = 0 ---
    out = parallel_opt_learned_positional_embedding(
        attention_mask, weight, mu, epsilon=epsilon, offset=offset,
        past_key_values_length=0)
    out = jax.block_until_ready(out)
    ref = _reference(attention_mask, weight, mu, epsilon=epsilon, offset=offset)
    assert out.shape == (P, B, S, D), out.shape
    assert jnp.allclose(out, ref, atol=1e-5), "kernel output mismatch (pkv=0)"

    # --- case 2: non-zero past_key_values_length (sliced before the kernel) ---
    S_full = 16
    pkv = 8
    lengths2 = jnp.array([S_full, S_full - 5], dtype=jnp.int32)
    mask2 = (jnp.arange(S_full)[None, :] < lengths2[:, None]).astype(jnp.int32)
    out2 = parallel_opt_learned_positional_embedding(
        mask2, weight, mu, epsilon=epsilon, offset=offset,
        past_key_values_length=pkv)
    out2 = jax.block_until_ready(out2)
    ref2 = _reference(mask2, weight, mu, epsilon=epsilon, offset=offset,
                      past_key_values_length=pkv)
    assert out2.shape == (P, B, S_full - pkv, D), out2.shape
    assert jnp.allclose(out2, ref2, atol=1e-5), "kernel output mismatch (pkv>0)"

    print("KERNEL_OK")
</pallas_src>

<mosaic_0001>
module attributes {stable_mosaic.version = 11 : i64} {
  func.func @_pos_embed_kernel(%arg0: i32, %arg1: i32, %arg2: i32, %arg3: i32, %arg4: memref<1x8x1xi32, #tpu.memory_space<vmem>>, %arg5: memref<18x32xf32, #tpu.memory_space<vmem>>, %arg6: memref<1x18x32xf32, #tpu.memory_space<vmem>>, %arg7: memref<1x1x8x32xf32, #tpu.memory_space<vmem>>) attributes {dimension_semantics = [#tpu.dimension_semantics<parallel>, #tpu.dimension_semantics<parallel>, #tpu.dimension_semantics<parallel>, #tpu.dimension_semantics<parallel>], iteration_bounds = array<i64: 8, 2, 1, 1>, scalar_prefetch = 0 : i64, scratch_operands = 0 : i64, tpu.core_type = #tpu.core_type<tc>, window_params = [{transform_indices = @transform_0, window_bounds = array<i64: 1, 8, 1>}, {transform_indices = @transform_1, window_bounds = array<i64: 18, 32>}, {transform_indices = @transform_2, window_bounds = array<i64: 1, 18, 32>}, {transform_indices = @transform_3, window_bounds = array<i64: 1, 1, 8, 32>}]} {
    %c0 = arith.constant 0 : index
    %c0_0 = arith.constant 0 : index
    %c0_1 = arith.constant 0 : index
    %0 = vector.load %arg4[%c0, %c0_0, %c0_1] : memref<1x8x1xi32, #tpu.memory_space<vmem>>, vector<1x8x1xi32>
    %1 = vector.shape_cast %0 : vector<1x8x1xi32> to vector<8x1xi32>
    %2 = tpu.iota {dimensions = array<i32: 1>} : vector<8x18xi32>
    %3 = vector.broadcast %1 : vector<8x1xi32> to vector<8x18xi32>
    %4 = arith.cmpi eq, %3, %2 : vector<8x18xi32>
    %5 = arith.extui %4 : vector<8x18xi1> to vector<8x18xi32>
    %6 = arith.sitofp %5 : vector<8x18xi32> to vector<8x18xf32>
    %c0_2 = arith.constant 0 : index
    %c0_3 = arith.constant 0 : index
    %7 = vector.load %arg5[%c0_2, %c0_3] : memref<18x32xf32, #tpu.memory_space<vmem>>, vector<18x32xf32>
    %cst = arith.constant dense<0.000000e+00> : vector<8x32xf32>
    %8 = tpu.matmul %6, %7, %cst {dimension_numbers = #tpu.dot_dimension_numbers<[1], [0], [0], [1], [0, 0, 1, 1], [], []>} : vector<8x18xf32>, vector<18x32xf32>, vector<8x32xf32> -> vector<8x32xf32>
    %c0_4 = arith.constant 0 : index
    %c0_5 = arith.constant 0 : index
    %c0_6 = arith.constant 0 : index
    %9 = vector.load %arg6[%c0_4, %c0_5, %c0_6] : memref<1x18x32xf32, #tpu.memory_space<vmem>>, vector<1x18x32xf32>
    %10 = vector.shape_cast %9 : vector<1x18x32xf32> to vector<18x32xf32>
    %cst_7 = arith.constant dense<0.000000e+00> : vector<8x32xf32>
    %11 = tpu.matmul %6, %10, %cst_7 {dimension_numbers = #tpu.dot_dimension_numbers<[1], [0], [0], [1], [0, 0, 1, 1], [], []>} : vector<8x18xf32>, vector<18x32xf32>, vector<8x32xf32> -> vector<8x32xf32>
    %cst_8 = arith.constant 0.00999999977 : f32
    %12 = vector.broadcast %cst_8 : f32 to vector<8x32xf32>
    %13 = arith.mulf %12, %11 : vector<8x32xf32>
    %14 = arith.addf %8, %13 : vector<8x32xf32>
    %c0_9 = arith.constant 0 : index
    %c0_10 = arith.constant 0 : index
    %c0_11 = arith.constant 0 : index
    %c0_12 = arith.constant 0 : index
    %15 = vector.load %arg7[%c0_9, %c0_10, %c0_11, %c0_12] : memref<1x1x8x32xf32, #tpu.memory_space<vmem>>, vector<1x1x8x32xf32>
    %16 = vector.shape_cast %15 : vector<1x1x8x32xf32> to vector<8x32xf32>
    %17 = vector.shape_cast %14 : vector<8x32xf32> to vector<1x1x8x32xf32>
    tpu.vector_store %arg7[%c0_9, %c0_10, %c0_11, %c0_12], %17 {strides = array<i32>} : memref<1x1x8x32xf32, #tpu.memory_space<vmem>>, vector<1x1x8x32xf32>,
    return
  }
  func.func @transform_0(%arg0: i32, %arg1: i32, %arg2: i32, %arg3: i32) -> (i32, i32, i32) {
    %c0_i32 = arith.constant 0 : i32
    %c0_i32_0 = arith.constant 0 : i32
    return %arg1, %arg2, %c0_i32 : i32, i32, i32
  }
  func.func @transform_1(%arg0: i32, %arg1: i32, %arg2: i32, %arg3: i32) -> (i32, i32) {
    %c0_i32 = arith.constant 0 : i32
    %c0_i32_0 = arith.constant 0 : i32
    return %c0_i32, %arg3 : i32, i32
  }
  func.func @transform_2(%arg0: i32, %arg1: i32, %arg2: i32, %arg3: i32) -> (i32, i32, i32) {
    %c0_i32 = arith.constant 0 : i32
    %c0_i32_0 = arith.constant 0 : i32
    return %arg0, %c0_i32, %arg3 : i32, i32, i32
  }
  func.func @transform_3(%arg0: i32, %arg1: i32, %arg2: i32, %arg3: i32) -> (i32, i32, i32, i32) {
    %c0_i32 = arith.constant 0 : i32
    return %arg0, %arg1, %arg2, %arg3 : i32, i32, i32, i32
  }
}

</mosaic_0001>

<llo_original>
// kernel: tpu_custom_call.1
$region0: #{tpu_custom_call.1}
  #allocation0 [shape = 'u32[]', space=smem, size = 0x4, offset = 0x4, fixed_abs, tag = 'smem constant byte address 0x4 - core index']
  #allocation1 [shape = 'u32[144,128]{1,0:T(1,128)}', space=vmem, size = 0x12000, scoped, tag = 'internal scratch']
  %s0 = inlined_call_operand.hbm [shape: s32[2,8,1], index: 0, kind: input, shape index: {}]
  %s1 = inlined_call_operand.hbm [shape: f32[18,32], index: 1, kind: input, shape index: {}]
  %s2 = inlined_call_operand.hbm [shape: f32[8,18,32], index: 2, kind: input, shape index: {}]
  %s3 = inlined_call_operand.hbm [shape: f32[8,2,8,32], index: 3, kind: output, shape index: {}]
  %s4 = sld [smem:[#allocation0]]
  $region57: #{tpu_custom_call.1} parent=0
    _
  %s6 = ssub.s32 1, %s4
  %s7 = scalar_select 0, %s6, %s4
  $region1: #{tpu_custom_call.1} parent=0
    #allocation2 [shape = 'u8[8192]{0}', space=vmem, size = 0x2000, scoped, tag = 'input window, operand 0']
    #allocation3 [shape = 's32[2]{0}', space=sflag, size = 0x8, scoped, tag = 'scoped memory for tpu_custom_call.1']
    #allocation4 [shape = 's32[2]{0}', space=sflag, size = 0x8, scoped, tag = 'scoped memory for tpu_custom_call.1']
    #allocation5 [shape = 'u8[12288]{0}', space=vmem, size = 0x3000, scoped, tag = 'input window, operand 1, single buffered']
    #allocation6 [shape = 's32[1]{0}', space=sflag, size = 0x4, scoped, tag = 'scoped memory for tpu_custom_call.1']
    #allocation7 [shape = 'u8[24576]{0}', space=vmem, size = 0x6000, scoped, tag = 'input window, operand 2']
    #allocation8 [shape = 'u8[8192]{0}', space=vmem, size = 0x2000, scoped, tag = 'output window, operand 0']
    %8 = vsyncpa [#allocation3], 0
    %s9 = scalar_lea.sflag [#allocation3], 1
    %10 = vsyncpa %s9, 0
    %11 = vsyncpa [#allocation6], 0
    %12 = vsyncpa [#allocation4], 0
    %s13 = scalar_lea.sflag [#allocation4], 1
    %14 = vsyncpa %s13, 0
    loop: start=0, step=1, limit=18
    $region2: #{tpu_custom_call.1} parent=1 // loop_pre_header
      _
    $region3: #{tpu_custom_call.1} parent=1 // loop_header
      %s16 = sphi 0, %s20
      %p17 = scmp.ge.s32.totalorder %s16, 18
      %s23 = sphi 0, %s49
      %s24 = sphi 0, %s45
      %s25 = sphi 0, %s41
      %s26 = sphi 0, %s37
      %s27 = sphi 0, %s23
      %s28 = sphi 0, %s24
      %s29 = sphi 0, %s25
      %s30 = sphi 0, %s26
      %s31 = sphi 0, %s27
      %s32 = sphi 0, %s28
      %s33 = sphi 0, %s29
      %s34 = sphi 0, %s30
      %s54 = sphi 0, %s56
      %s57 = sphi 0, %s54
      %s58 = sphi 0, %s57
      %s74 = sphi 0, %s58
      %s80 = sphi 0, %s82
      %s83 = sphi 0, %s80
      %s84 = sphi 0, %s83
      %s100 = sphi 0, %s84
      %s108 = sphi 0, %s110
      %s111 = sphi 0, %s108
      %s112 = sphi 0, %s111
      %s128 = sphi 0, %s112
      %s140 = sphi 0, %s142
      %s143 = sphi 0, %s140
      %s144 = sphi 0, %s143
      %s160 = sphi 0, %s144
    $region4: #{tpu_custom_call.1} parent=1 // loop_header_branch
      %19 = sbr.rel (%p17) target = $region8
    $region5: #{tpu_custom_call.1} parent=1 // loop_body
      %s21 = ssub.s32 %s16, 1
      %s22 = ssub.s32 %s16, 2
      %s35 = sadd.s32 1, %s26
      %p36 = scmp.ge.s32.totalorder %s35, 1
      %s37 = scalar_select %p36, 0, %s35
      %s38 = sadd.s32 1, %s25
      %s39 = scalar_select %p36, %s38, %s25
      %p40 = scmp.ge.s32.totalorder %s39, 1
      %s41 = scalar_select %p40, 0, %s39
      %s42 = sadd.s32 1, %s24
      %s43 = scalar_select %p40, %s42, %s24
      %p44 = scmp.ge.s32.totalorder %s43, 2
      %s45 = scalar_select %p44, 0, %s43
      %s46 = sadd.s32 1, %s23
      %s47 = scalar_select %p44, %s46, %s23
      %p48 = scmp.ge.s32.totalorder %s47, 8
      %s49 = scalar_select %p48, 0, %s47
      %s50 = ssub.s32 %s24, %s45
      %s51 = ssub.s32 %s25, %s41
      %s52 = sor.u32 %s50, %s51
      %p53 = scmp.eq.s32.totalorder %s52, 0
      %s55 = sadd.s32 %s54, 1
      %s56 = scalar_select %p53, %s54, %s55
      %p59 = pneg %p53
      %p60 = scmp.eq.s32.totalorder %s16, 15
      %p61 = por %p59, %p60
      %p62 = scmp.ne.s32.totalorder %s54, %s57
      %p63 = scmp.eq.s32.totalorder %s16, 0
      %p64 = por %p62, %p63
      %p65 = scmp.ne.s32.totalorder %s54, %s57
      %p66 = scmp.eq.s32.totalorder %s21, 15
      %p67 = por %p65, %p66
      %p68 = scmp.ne.s32.totalorder %s57, %s58
      %p69 = scmp.eq.s32.totalorder %s21, 0
      %p70 = por %p68, %p69
      %p71 = scmp.ne.s32.totalorder %s57, %s58
      %p72 = scmp.eq.s32.totalorder %s22, 15
      %p73 = por %p71, %p72
      %p75 = scmp.ne.s32.totalorder %s58, %s74
      %p76 = scmp.eq.s32.totalorder %s22, 0
      %p77 = por %p75, %p76
      %s78 = ssub.s32 %s26, %s37
      %p79 = scmp.eq.s32.totalorder %s78, 0
      %s81 = sadd.s32 %s80, 1
      %s82 = scalar_select %p79, %s80, %s81
      %p85 = pneg %p79
      %p86 = scmp.eq.s32.totalorder %s16, 15
      %p87 = por %p85, %p86
      %p88 = scmp.ne.s32.totalorder %s80, %s83
      %p89 = scmp.eq.s32.totalorder %s16, 0
      %p90 = por %p88, %p89
      %p91 = scmp.ne.s32.totalorder %s80, %s83
      %p92 = scmp.eq.s32.totalorder %s21, 15
      %p93 = por %p91, %p92
      %p94 = scmp.ne.s32.totalorder %s83, %s84
      %p95 = scmp.eq.s32.totalorder %s21, 0
      %p96 = por %p94, %p95
      %p97 = scmp.ne.s32.totalorder %s83, %s84
      %p98 = scmp.eq.s32.totalorder %s22, 15
      %p99 = por %p97, %p98
      %p101 = scmp.ne.s32.totalorder %s84, %s100
      %p102 = scmp.eq.s32.totalorder %s22, 0
      %p103 = por %p101, %p102
      %s104 = ssub.s32 %s23, %s49
      %s105 = ssub.s32 %s26, %s37
      %s106 = sor.u32 %s104, %s105
      %p107 = scmp.eq.s32.totalorder %s106, 0
      %s109 = sadd.s32 %s108, 1
      %s110 = scalar_select %p107, %s108, %s109
      %p113 = pneg %p107
      %p114 = scmp.eq.s32.totalorder %s16, 15
      %p115 = por %p113, %p114
      %p116 = scmp.ne.s32.totalorder %s108, %s111
      %p117 = scmp.eq.s32.totalorder %s16, 0
      %p118 = por %p116, %p117
      %p119 = scmp.ne.s32.totalorder %s108, %s111
      %p120 = scmp.eq.s32.totalorder %s21, 15
      %p121 = por %p119, %p120
      %p122 = scmp.ne.s32.totalorder %s111, %s112
      %p123 = scmp.eq.s32.totalorder %s21, 0
      %p124 = por %p122, %p123
      %p125 = scmp.ne.s32.totalorder %s111, %s112
      %p126 = scmp.eq.s32.totalorder %s22, 15
      %p127 = por %p125, %p126
      %p129 = scmp.ne.s32.totalorder %s112, %s128
      %p130 = scmp.eq.s32.totalorder %s22, 0
      %p131 = por %p129, %p130
      %s132 = ssub.s32 %s23, %s49
      %s133 = ssub.s32 %s24, %s45
      %s134 = sor.u32 %s132, %s133
      %s135 = ssub.s32 %s25, %s41
      %s136 = sor.u32 %s134, %s135
      %s137 = ssub.s32 %s26, %s37
      %s138 = sor.u32 %s136, %s137
      %p139 = scmp.eq.s32.totalorder %s138, 0
      %s141 = sadd.s32 %s140, 1
      %s142 = scalar_select %p139, %s140, %s141
      %p145 = pneg %p139
      %p146 = scmp.eq.s32.totalorder %s16, 15
      %p147 = por %p145, %p146
      %p148 = scmp.ne.s32.totalorder %s140, %s143
      %p149 = scmp.eq.s32.totalorder %s16, 0
      %p150 = por %p148, %p149
      %p151 = scmp.ne.s32.totalorder %s140, %s143
      %p152 = scmp.eq.s32.totalorder %s21, 15
      %p153 = por %p151, %p152
      %p154 = scmp.ne.s32.totalorder %s143, %s144
      %p155 = scmp.eq.s32.totalorder %s21, 0
      %p156 = por %p154, %p155
      %p157 = scmp.ne.s32.totalorder %s143, %s144
      %p158 = scmp.eq.s32.totalorder %s22, 15
      %p159 = por %p157, %p158
      %p161 = scmp.ne.s32.totalorder %s144, %s160
      %p162 = scmp.eq.s32.totalorder %s22, 0
      %p163 = por %p161, %p162
      %p164 = scmp.le.s32.totalorder 1, %s16
      %p165 = scmp.lt.s32.totalorder %s16, 17
      %p166 = pnand %p164, %p165
      %p167 = pneg %p166
      // Predicated region
      $region9: #{tpu_custom_call.1} parent=5 // pred_check
        _
      $region10: #{tpu_custom_call.1} parent=5 // pred_check_branch
        %169 = sbr.rel (%p166) target = $region12
      $region11: #{tpu_custom_call.1} parent=5 // pred_region
        %s170 = ssub.s32 %s16, 1
        // Predicated region
        $region13: #{tpu_custom_call.1} parent=11 // pred_check
          %p171 = pneg %p96
        $region14: #{tpu_custom_call.1} parent=11 // pred_check_branch
          %173 = sbr.rel (%p171) target = $region16
        $region15: #{tpu_custom_call.1} parent=11 // pred_region
          %s175 = ssub.s32 384, 384
          %176 = vsyncadd [#allocation6], %s175
          %s177 = smul.addr %s30, 128
          %s178 = scalar_lea.hbm %s1, %s177
          %s179 = sshll.u32 [#allocation5], 4
          %s180 = int_to_ptr.vmem [resolvable:$true] %s179
          %185 = dma.hbm_to_vmem [thread:$0]  %s178, 384, %s180, [#allocation6], 128, 128, 8
        $region16: #{tpu_custom_call.1} parent=11 // pred_fallthru
          _
      $region12: #{tpu_custom_call.1} parent=5 // pred_fallthru
        _
      %p186 = scmp.lt.s32.totalorder %s16, 16
      // Predicated region
      $region17: #{tpu_custom_call.1} parent=5 // pred_check
        %p187 = pneg %p186
      $region18: #{tpu_custom_call.1} parent=5 // pred_check_branch
        %189 = sbr.rel (%p187) target = $region20
      $region19: #{tpu_custom_call.1} parent=5 // pred_region
        // Predicated region
        $region21: #{tpu_custom_call.1} parent=19 // pred_check
          %p190 = pneg %p64
        $region22: #{tpu_custom_call.1} parent=19 // pred_check_branch
          %192 = sbr.rel (%p190) target = $region24
        $region23: #{tpu_custom_call.1} parent=19 // pred_region
          %s193 = sand.u32 %s16, 1
          %s194 = scalar_lea.sflag [#allocation3], %s193
          %s195 = sand.u32 %s54, 1
          %s196 = smul.addr %s195, 8
          %s197 = scalar_lea.vmem [#allocation2], %s196
          %s199 = ssub.s32 128, 128
          %200 = vsyncadd %s194, %s199
          %s201 = sadd.s32 %s25, %s24
          %s202 = smul.addr %s201, 128
          %s203 = scalar_lea.hbm %s0, %s202
          %s205 = sshll.u32 %s197, 4
          %s206 = int_to_ptr.vmem [resolvable:$true] %s205
          %208 = dma.hbm_to_vmem [thread:$0]  %s203, 128, %s206, %s194
        $region24: #{tpu_custom_call.1} parent=19 // pred_fallthru
          _
        // Predicated region
        $region25: #{tpu_custom_call.1} parent=19 // pred_check
          %p209 = pneg %p118
        $region26: #{tpu_custom_call.1} parent=19 // pred_check_branch
          %211 = sbr.rel (%p209) target = $region28
        $region27: #{tpu_custom_call.1} parent=19 // pred_region
          %s212 = sand.u32 %s16, 1
          %s213 = scalar_lea.sflag [#allocation3], %s212
          %s214 = sand.u32 %s108, 1
          %s215 = smul.addr %s214, 24
          %s216 = scalar_lea.vmem [#allocation7], %s215
          %s218 = ssub.s32 384, 384
          %219 = vsyncadd %s213, %s218
          %s220 = smul.addr %s23, 3
          %s221 = sadd.s32 %s26, %s220
          %s222 = smul.addr %s221, 128
          %s223 = scalar_lea.hbm %s2, %s222
          %s224 = sshll.u32 %s216, 4
          %s225 = int_to_ptr.vmem [resolvable:$true] %s224
          %230 = dma.hbm_to_vmem [thread:$0]  %s223, 384, %s225, %s213, 128, 128, 8
        $region28: #{tpu_custom_call.1} parent=19 // pred_fallthru
          _
      $region20: #{tpu_custom_call.1} parent=5 // pred_fallthru
        _
      %p231 = scmp.le.s32.totalorder 1, %s16
      %p232 = scmp.lt.s32.totalorder %s16, 17
      %p233 = pnand %p231, %p232
      %p234 = pneg %p233
      // Predicated region
      $region29: #{tpu_custom_call.1} parent=5 // pred_check
        _
      $region30: #{tpu_custom_call.1} parent=5 // pred_check_branch
        %236 = sbr.rel (%p233) target = $region32
      $region31: #{tpu_custom_call.1} parent=5 // pred_region
        %s237 = ssub.s32 %s16, 1
        %s238 = sand.u32 %s21, 1
        %s239 = scalar_lea.sflag [#allocation3], %s238
        %s240 = sand.u32 %s57, 1
        %s241 = smul.addr %s240, 8
        %s242 = scalar_lea.vmem [#allocation2], %s241
        // Predicated region
        $region33: #{tpu_custom_call.1} parent=31 // pred_check
          %p243 = pneg %p70
        $region34: #{tpu_custom_call.1} parent=31 // pred_check_branch
          %245 = sbr.rel (%p243) target = $region36
        $region35: #{tpu_custom_call.1} parent=31 // pred_region
          %246 = dma.done %s239, 128
        $region36: #{tpu_custom_call.1} parent=31 // pred_fallthru
          _
        // Predicated region
        $region37: #{tpu_custom_call.1} parent=31 // pred_check
          %p247 = pneg %p96
        $region38: #{tpu_custom_call.1} parent=31 // pred_check_branch
          %249 = sbr.rel (%p247) target = $region40
        $region39: #{tpu_custom_call.1} parent=31 // pred_region
          %250 = dma.done [#allocation6], 384
        $region40: #{tpu_custom_call.1} parent=31 // pred_fallthru
          _
        %s251 = sand.u32 %s21, 1
        %s252 = scalar_lea.sflag [#allocation3], %s251
        %s253 = sand.u32 %s111, 1
        %s254 = smul.addr %s253, 24
        %s255 = scalar_lea.vmem [#allocation7], %s254
        // Predicated region
        $region41: #{tpu_custom_call.1} parent=31 // pred_check
          %p256 = pneg %p124
        $region42: #{tpu_custom_call.1} parent=31 // pred_check_branch
          %258 = sbr.rel (%p256) target = $region44
        $region43: #{tpu_custom_call.1} parent=31 // pred_region
          %259 = dma.done %s252, 384
        $region44: #{tpu_custom_call.1} parent=31 // pred_fallthru
          _
        %s260 = sand.u32 %s21, 1
        %s261 = scalar_lea.sflag [#allocation3], %s260
        %s262 = sand.u32 %s57, 1
        %s263 = smul.addr %s262, 8
        %s264 = scalar_lea.vmem [#allocation2], %s263
        %p265 = pneg %p70
        %p266 = pneg %p67
        %p267 = pneg %p96
        %p268 = pneg %p93
        %s269 = sand.u32 %s21, 1
        %s270 = scalar_lea.sflag [#allocation3], %s269
        %s271 = sand.u32 %s111, 1
        %s272 = smul.addr %s271, 24
        %s273 = scalar_lea.vmem [#allocation7], %s272
        %p274 = pneg %p124
        %p275 = pneg %p121
        %p276 = pneg %p156
        %p277 = pneg %p153
        %s278 = sand.u32 %s143, 1
        %s279 = scalar_lea.sflag [#allocation4], %s278
        %s280 = sand.u32 %s143, 1
        %s281 = smul.addr %s280, 8
        %s282 = scalar_lea.vmem [#allocation8], %s281
        %v283 = vld [vmem:[%s242] sm:$0xff]
        %v284 = vlaneseq
        %v285 = vand.u32 %v284, 127
        %286 = vset.pattern.permute.xlu0 0
        %287 = vperm.xlu0 %286, %v283
        %v288 = vpop.permute.xlu0 %287
        %vm289 = vcmp.eq.s32.totalorder %v288, %v285
        %v290 = vsel %vm289, 1, 0
        %v291 = vcvt.s32.f32 %v290
        %v292 = vld [vmem:[#allocation5] sm:$0xff]
        %v293 = vld [vmem:[#allocation5 + $0x8] sm:$0xff]
        %v294 = vld [vmem:[#allocation5 + $0x10] sm:$0x3]
        %v295 = vld [vmem:[%s255] sm:$0xff]
        %v296 = vld [vmem:[%s255 + $0x8] sm:$0xff]
        %v297 = vld [vmem:[%s255 + $0x10] sm:$0x3]
        %vm298 = vcmask 146432
        %v300 = vsel %vm298, %v291, 0
        %vm302 = vcmask 1041408
        %v304 = vsel %vm302, %v297, 0
        %306 = vmatprep.subr.mxu0 0.0
        %307 = vmatpush1.msra.mxu0 %v295
        %308 = vmatprep.subr.mxu0 0.0
        %309 = vmatpush1.msra.mxu0 %v296
        %310 = vmatprep.subr.mxu0 0.0
        %311 = vmatpush1.msra.mxu0 %v304
        %312 = vmatprep.subr.mxu0 0.0
        %313 = vmatpush1.msra.mxu0 0.0
        %314 = vmatprep.subr.mxu0 0.0
        %315 = vmatpush1.msra.mxu0 0.0
        %316 = vmatprep.subr.mxu0 0.0
        %317 = vmatpush1.msra.mxu0 0.0
        %318 = vmatprep.subr.mxu0 0.0
        %319 = vmatpush1.msra.mxu0 0.0
        %320 = vmatprep.subr.mxu0 0.0
        %321 = vmatpush1.msra.mxu0 0.0
        %322 = vmatprep.subr.mxu0 0.0
        %323 = vmatpush1.msra.mxu0 0.0
        %324 = vmatprep.subr.mxu0 0.0
        %325 = vmatpush1.msra.mxu0 0.0
        %326 = vmatprep.subr.mxu0 0.0
        %327 = vmatpush1.msra.mxu0 0.0
        %328 = vmatprep.subr.mxu0 0.0
        %329 = vmatpush1.msra.mxu0 0.0
        %330 = vmatprep.subr.mxu0 0.0
        %331 = vmatpush1.msra.mxu0 0.0
        %332 = vmatprep.subr.mxu0 0.0
        %333 = vmatpush1.msra.mxu0 0.0
        %334 = vmatprep.subr.mxu0 0.0
        %335 = vmatpush1.msra.mxu0 0.0
        %336 = vmatprep.subr.mxu0 0.0
        %337 = vmatpush1.msra.mxu0 0.0
        %338 = vmatprep.subr.mxu0 0.0
        %339 = vmatpush1.msra.mxu0 0.0
        %340 = vmatprep.subr.mxu0 0.0
        %341 = vmatpush1.msra.mxu0 0.0
        %342 = vmatprep.subr.mxu0 0.0
        %343 = vmatpush1.msra.mxu0 0.0
        %344 = vmatprep.subr.mxu0 0.0
        %345 = vmatpush1.msra.mxu0 0.0
        %346 = vmatprep.subr.mxu0 0.0
        %347 = vmatpush1.msra.mxu0 0.0
        %348 = vmatprep.subr.mxu0 0.0
        %349 = vmatpush1.msra.mxu0 0.0
        %350 = vmatprep.subr.mxu0 0.0
        %351 = vmatpush1.msra.mxu0 0.0
        %352 = vmatprep.subr.mxu0 0.0
        %353 = vmatpush1.msra.mxu0 0.0
        %354 = vmatprep.subr.mxu0 0.0
        %355 = vmatpush1.msra.mxu0 0.0
        %356 = vmatprep.subr.mxu0 0.0
        %357 = vmatpush1.msra.mxu0 0.0
        %358 = vmatprep.subr.mxu0 0.0
        %359 = vmatpush1.msra.mxu0 0.0
        %360 = vmatprep.subr.mxu0 0.0
        %361 = vmatpush1.msra.mxu0 0.0
        %362 = vmatprep.subr.mxu0 0.0
        %363 = vmatpush1.msra.mxu0 0.0
        %364 = vmatprep.subr.mxu0 0.0
        %365 = vmatpush1.msra.mxu0 0.0
        %366 = vmatprep.subr.mxu0 0.0
        %367 = vmatpush1.msra.mxu0 0.0
        %368 = vmatprep.subr.mxu0 0.0
        %369 = vmatpush1.msra.mxu0 0.0
        %370 = vmatprep.mubr.f32.mxu0 0.0
        %371 = vmatmul.mubr.f32.gmra.mrb[0].mxu0 %v300
        %v372 = vpop.f32.mrb[0].mxu0
        %v373 = vadd.f32 0.0, %v372
        %v374 = vpop.f32.mrb[0].mxu0
        %375 = vdwg.mxu0
        %v376 = vmul.f32 %v373, 0.01
        %v378 = vsel %vm302, %v294, 0
        %380 = vmatprep.subr.mxu0 0.0
        %381 = vmatpush1.msra.mxu0 %v292
        %382 = vmatprep.subr.mxu0 0.0
        %383 = vmatpush1.msra.mxu0 %v293
        %384 = vmatprep.subr.mxu0 0.0
        %385 = vmatpush1.msra.mxu0 %v378
        %386 = vmatprep.subr.mxu0 0.0
        %387 = vmatpush1.msra.mxu0 0.0
        %388 = vmatprep.subr.mxu0 0.0
        %389 = vmatpush1.msra.mxu0 0.0
        %390 = vmatprep.subr.mxu0 0.0
        %391 = vmatpush1.msra.mxu0 0.0
        %392 = vmatprep.subr.mxu0 0.0
        %393 = vmatpush1.msra.mxu0 0.0
        %394 = vmatprep.subr.mxu0 0.0
        %395 = vmatpush1.msra.mxu0 0.0
        %396 = vmatprep.subr.mxu0 0.0
        %397 = vmatpush1.msra.mxu0 0.0
        %398 = vmatprep.subr.mxu0 0.0
        %399 = vmatpush1.msra.mxu0 0.0
        %400 = vmatprep.subr.mxu0 0.0
        %401 = vmatpush1.msra.mxu0 0.0
        %402 = vmatprep.subr.mxu0 0.0
        %403 = vmatpush1.msra.mxu0 0.0
        %404 = vmatprep.subr.mxu0 0.0
        %405 = vmatpush1.msra.mxu0 0.0
        %406 = vmatprep.subr.mxu0 0.0
        %407 = vmatpush1.msra.mxu0 0.0
        %408 = vmatprep.subr.mxu0 0.0
        %409 = vmatpush1.msra.mxu0 0.0
        %410 = vmatprep.subr.mxu0 0.0
        %411 = vmatpush1.msra.mxu0 0.0
        %412 = vmatprep.subr.mxu0 0.0
        %413 = vmatpush1.msra.mxu0 0.0
        %414 = vmatprep.subr.mxu0 0.0
        %415 = vmatpush1.msra.mxu0 0.0
        %416 = vmatprep.subr.mxu0 0.0
        %417 = vmatpush1.msra.mxu0 0.0
        %418 = vmatprep.subr.mxu0 0.0
        %419 = vmatpush1.msra.mxu0 0.0
        %420 = vmatprep.subr.mxu0 0.0
        %421 = vmatpush1.msra.mxu0 0.0
        %422 = vmatprep.subr.mxu0 0.0
        %423 = vmatpush1.msra.mxu0 0.0
        %424 = vmatprep.subr.mxu0 0.0
        %425 = vmatpush1.msra.mxu0 0.0
        %426 = vmatprep.subr.mxu0 0.0
        %427 = vmatpush1.msra.mxu0 0.0
        %428 = vmatprep.subr.mxu0 0.0
        %429 = vmatpush1.msra.mxu0 0.0
        %430 = vmatprep.subr.mxu0 0.0
        %431 = vmatpush1.msra.mxu0 0.0
        %432 = vmatprep.subr.mxu0 0.0
        %433 = vmatpush1.msra.mxu0 0.0
        %434 = vmatprep.subr.mxu0 0.0
        %435 = vmatpush1.msra.mxu0 0.0
        %436 = vmatprep.subr.mxu0 0.0
        %437 = vmatpush1.msra.mxu0 0.0
        %438 = vmatprep.subr.mxu0 0.0
        %439 = vmatpush1.msra.mxu0 0.0
        %440 = vmatprep.subr.mxu0 0.0
        %441 = vmatpush1.msra.mxu0 0.0
        %442 = vmatprep.subr.mxu0 0.0
        %443 = vmatpush1.msra.mxu0 0.0
        %444 = vmatprep.mubr.f32.mxu0 0.0
        %445 = vmatmul.mubr.f32.gmra.mrb[0].mxu0 %v300
        %v446 = vpop.f32.mrb[0].mxu0
        %v447 = vadd.f32 %v376, %v446
        %v448 = vpop.f32.mrb[0].mxu0
        %449 = vdwg.mxu0
        %vm450 = vcmask 261120
        %451 = vst.msk [vmem:[%s282] sm:$0xff] %vm450, %v447
        %s452 = sand.u32 %s143, 1
        %s453 = scalar_lea.sflag [#allocation4], %s452
        %s454 = sand.u32 %s143, 1
        %s455 = smul.addr %s454, 8
        %s456 = scalar_lea.vmem [#allocation8], %s455
        // Predicated region
        $region45: #{tpu_custom_call.1} parent=31 // pred_check
          %p457 = pneg %p153
        $region46: #{tpu_custom_call.1} parent=31 // pred_check_branch
          %459 = sbr.rel (%p457) target = $region48
        $region47: #{tpu_custom_call.1} parent=31 // pred_region
          %s461 = ssub.s32 128, 128
          %462 = vsyncadd %s453, %s461
          %s463 = sadd.s32 %s30, %s29
          %s464 = sadd.s32 %s463, %s28
          %s465 = smul.addr %s27, 2
          %s466 = sadd.s32 %s464, %s465
          %s467 = smul.addr %s466, 128
          %s468 = scalar_lea.hbm %s3, %s467
          %s470 = sshll.u32 %s456, 4
          %s471 = int_to_ptr.vmem [resolvable:$true] %s470
          %473 = dma.vmem_to_hbm [thread:$0]  %s471, 128, %s468, %s453
        $region48: #{tpu_custom_call.1} parent=31 // pred_fallthru
          _
      $region32: #{tpu_custom_call.1} parent=5 // pred_fallthru
        _
      %p474 = scmp.le.s32.totalorder 2, %s16
      // Predicated region
      $region49: #{tpu_custom_call.1} parent=5 // pred_check
        %p475 = pneg %p474
      $region50: #{tpu_custom_call.1} parent=5 // pred_check_branch
        %477 = sbr.rel (%p475) target = $region52
      $region51: #{tpu_custom_call.1} parent=5 // pred_region
        %s478 = ssub.s32 %s16, 2
        // Predicated region
        $region53: #{tpu_custom_call.1} parent=51 // pred_check
          %p479 = pneg %p159
        $region54: #{tpu_custom_call.1} parent=51 // pred_check_branch
          %481 = sbr.rel (%p479) target = $region56
        $region55: #{tpu_custom_call.1} parent=51 // pred_region
          %s482 = sand.u32 %s144, 1
          %s483 = scalar_lea.sflag [#allocation4], %s482
          %s484 = sand.u32 %s144, 1
          %s485 = smul.addr %s484, 8
          %s486 = scalar_lea.vmem [#allocation8], %s485
          %487 = dma.done %s483, 128
        $region56: #{tpu_custom_call.1} parent=51 // pred_fallthru
          _
      $region52: #{tpu_custom_call.1} parent=5 // pred_fallthru
        _
    $region6: #{tpu_custom_call.1} parent=1 // loop_footer
      %s20 = sadd.s32 1, %s16
    $region7: #{tpu_custom_call.1} parent=1 // loop_footer_branch
      %15 = sbr.rel target = $region3
    $region8: #{tpu_custom_call.1} parent=1 // loop_exit
      _
    %488 = vsyncpa [#allocation3], 1
    %s489 = scalar_lea.sflag [#allocation3], 1
    %490 = vsyncpa %s489, 1
    %491 = vsyncpa [#allocation6], 1
    %492 = vsyncpa [#allocation4], 1
    %s493 = scalar_lea.sflag [#allocation4], 1
    %494 = vsyncpa %s493, 1

</llo_original>
